<compile_context>
chip_gen: v7x
topology: tpu7x:2x2x1
jax: 0.10.0
libtpu: 0.0.40
codegen_flags: <defaults>
</compile_context>

<pallas_src>
import functools
import math

import jax
import jax.numpy as jnp
import numpy as np
from jax import lax
from jax.experimental import pallas as pl
from jax.experimental.pallas import tpu as pltpu


def _magc_kernel(x_ref, w_ref, b_ref, o_ref, acc_ref, *, H, Kd):
    """One image per grid step.

    x_ref:   (1, Hp, Wp*Cin)        padded input, rows x (width*channels), bf16
    w_ref:   (Kd, Wp*Cin, W*Cout)   folded banded per-ky weights, bf16
    b_ref:   (1, W*Cout)            base-conv bias replicated across W, f32
    o_ref:   (1, H, W*Cout)         lane-dense output, f32
    acc_ref: (H, W*Cout)            f32 VMEM accumulator scratch
    """
    x = x_ref[0]                                           # (Hp, Wp*Cin) bf16
    # ky = 0 seeds the accumulator; remaining taps accumulate in place
    # (single accumulator address -> MRB in-place accumulate on v7x).
    acc_ref[...] = jnp.dot(x[0:H, :], w_ref[0],
                           preferred_element_type=jnp.float32)
    for ky in range(1, Kd):
        acc_ref[...] += jnp.dot(x[ky:ky + H, :], w_ref[ky],
                                preferred_element_type=jnp.float32)
    # f32 epilogue: bias add + relu, single full-width unmasked store.
    o_ref[0] = jnp.maximum(acc_ref[...] + b_ref[...], 0.0)


def prepare_magc_weights(base_w, base_b, dir_w, gate, W):
    """Weight prep — run ONCE per weight update, outside the per-call hot path.

    Folds the per-direction gates and the base 3x3 conv into one combined
    Kd x Kd kernel (exact linear reassociation), then builds Kd banded per-ky
    weights of shape (Kd, Wp*Cin, W*Cout) with
        wband[ky, (w+kx)*Cin + ci, w*Cout + co] = w_comb[ky, kx, ci, co]
    so a single (H, Wp*Cin) @ (Wp*Cin, W*Cout) matmul per ky computes all kx
    taps at once.  Also returns the bias replicated per output column.
    """
    Kd = dir_w.shape[1]
    Kb = base_w.shape[0]
    Cin, Cout = base_w.shape[2], base_w.shape[3]
    pad = Kd // 2
    Wp = W + 2 * pad

    # Fold gates + base conv into one Kd x Kd weight (linear reassociation).
    w_comb = jnp.einsum('do,dhwio->hwio', gate.astype(jnp.float32),
                        dir_w.astype(jnp.float32))          # (Kd,Kd,Cin,Cout)
    off = pad - Kb // 2
    w_comb = w_comb.at[off:off + Kb, off:off + Kb].add(base_w.astype(jnp.float32))

    # Banded selection S[kx, p, w] = 1 iff p == w + kx  (p in [0,Wp), w in [0,W)).
    p_idx = jnp.arange(Wp)
    w_idx = jnp.arange(W)
    kx_idx = jnp.arange(Kd)
    sel = (p_idx[None, :, None] == (w_idx[None, None, :] + kx_idx[:, None, None]))
    sel = sel.astype(jnp.float32)                           # (Kd, Wp, W)

    # wband[ky, p, ci, w, co] = sum_kx sel[kx,p,w] * w_comb[ky,kx,ci,co]
    wband = jnp.einsum('xpw,kxio->kpiwo', sel, w_comb)      # (Kd,Wp,Cin,W,Cout)
    wband = wband.reshape(Kd, Wp * Cin, W * Cout).astype(jnp.bfloat16)

    # bias replicated per output column: index w*Cout + co -> base_b[co]
    bias_row = jnp.tile(base_b.astype(jnp.float32), W).reshape(1, W * Cout)
    return wband, bias_row


def multi_angle_gated_conv(x_nhwc, wband, bias_row):
    """x_nhwc: (N,H,W,Cin); wband: (Kd, Wp*Cin, W*Cout) bf16 (from
    prepare_magc_weights); bias_row: (1, W*Cout) f32.  Returns (N,H,W,Cout) f32."""
    N, H, W, Cin = x_nhwc.shape
    Kd = wband.shape[0]
    pad = Kd // 2
    Hp, Wp = H + 2 * pad, W + 2 * pad
    assert wband.shape[1] == Wp * Cin
    WCout = wband.shape[2]
    Cout = WCout // W

    # Pad + cast activations to bf16 wrapper-side (halves DMA bytes; the MXU
    # operands are bf16 either way, accumulation stays f32 in-kernel).
    xp = jnp.pad(x_nhwc.astype(jnp.bfloat16),
                 ((0, 0), (pad, pad), (pad, pad), (0, 0)))
    x_flat = xp.reshape(N, Hp, Wp * Cin)

    kernel = functools.partial(_magc_kernel, H=H, Kd=Kd)

    # TODO(synk): for production-scale H/W/C, tile H into row bands with a
    # (Kd-1)-row halo in the x BlockSpec index_map and band W (the banded
    # weight grows ~ Wb*Wp*Cin*Wb*Cout), add the band axes to the grid as
    # "parallel", keep each W-band * Cout a multiple of 128 for unmasked
    # stores, and derive band sizes from per-generation VMEM
    # (v5e/v6e 128 MiB vs v7x 64 MiB) rather than reusing one tiling.
    out = pl.pallas_call(
        kernel,
        out_shape=jax.ShapeDtypeStruct((N, H, WCout), jnp.float32),
        grid=(N,),
        in_specs=[
            pl.BlockSpec((1, Hp, Wp * Cin), lambda n: (n, 0, 0)),
            # Grid-invariant weight & bias: single-buffered (no point
            # double-buffering a block whose index never changes).
            pl.BlockSpec((Kd, Wp * Cin, WCout), lambda n: (0, 0, 0),
                         pipeline_mode=pl.Buffered(1)),
            pl.BlockSpec((1, WCout), lambda n: (0, 0),
                         pipeline_mode=pl.Buffered(1)),
        ],
        out_specs=pl.BlockSpec((1, H, WCout), lambda n: (n, 0, 0)),
        scratch_shapes=[pltpu.VMEM((H, WCout), jnp.float32)],
        compiler_params=pltpu.CompilerParams(
            dimension_semantics=("parallel",),   # both v7x TCs get an image
            vmem_limit_bytes=32 << 20),
    )(x_flat, wband, bias_row)

    # wrapper-side layout plumbing back to NHWC
    return out.reshape(N, H, W, Cout)


def _reference(x_nhwc, base_w, base_b, dir_w, gate):
    dn = ('NHWC', 'HWIO', 'NHWC')
    out = lax.conv_general_dilated(x_nhwc, base_w, (1, 1), 'SAME',
                                   dimension_numbers=dn,
                                   precision=lax.Precision.HIGHEST)
    out = out + base_b[None, None, None, :]
    for d in range(dir_w.shape[0]):
        f = lax.conv_general_dilated(x_nhwc, dir_w[d], (1, 1), 'SAME',
                                     dimension_numbers=dn,
                                     precision=lax.Precision.HIGHEST)
        out = out + f * gate[d][None, None, None, :]
    return jnp.maximum(out, 0.0)


if __name__ == "__main__":
    # Small shapes consistent with the module: N=2, Cin=4, Cout=8, 16x16 spatial.
    N, Cin, Cout, H, W = 2, 4, 8, 16, 16
    K = 5
    angle_list = [0.0, math.pi / 4, math.pi / 2, 3 * math.pi / 4]
    D = len(angle_list)

    key = jax.random.PRNGKey(0)
    kx_, kw_, kb_, kg_, kd_ = jax.random.split(key, 5)

    # Input (PyTorch would be NCHW (2,4,16,16); NHWC internally).
    x_nchw = jax.random.normal(kx_, (N, Cin, H, W), dtype=jnp.float32)
    x_nhwc = jnp.transpose(x_nchw, (0, 2, 3, 1))

    # base_conv: Conv2d(Cin, Cout, 3, padding=1) -- deterministic synthetic init.
    fan_in = Cin * 3 * 3
    bound = 1.0 / math.sqrt(fan_in)
    base_w = jax.random.uniform(kw_, (3, 3, Cin, Cout), jnp.float32,
                                minval=-bound, maxval=bound)
    base_b = jax.random.uniform(kb_, (Cout,), jnp.float32,
                                minval=-bound, maxval=bound)

    # Direction kernels: 2D Gaussian (as in _init_direction_kernels) plus a
    # small per-direction perturbation, and non-trivial gates, so the
    # per-direction gating path is actually exercised (both are learnable).
    center = K // 2
    coords = jnp.arange(K, dtype=jnp.float32) - center
    yy, xx = jnp.meshgrid(coords, coords, indexing='ij')
    sigma = K / 2.0
    gauss = jnp.exp(-0.5 * (xx ** 2 + yy ** 2) / sigma ** 2)
    gauss = gauss / gauss.sum()
    dir_w = jnp.broadcast_to(gauss[None, :, :, None, None],
                             (D, K, K, Cin, Cout)).astype(jnp.float32)
    dir_w = dir_w + 0.02 * jax.random.normal(kd_, dir_w.shape, jnp.float32)
    gate = jax.random.uniform(kg_, (D, Cout), jnp.float32,
                              minval=0.5, maxval=1.5)

    # Weight prep (once per weight update; outside the per-call hot path).
    wband, bias_row = prepare_magc_weights(base_w, base_b, dir_w, gate, W)
    wband, bias_row = jax.block_until_ready((wband, bias_row))

    out = jax.block_until_ready(multi_angle_gated_conv(x_nhwc, wband, bias_row))
    ref = jax.block_until_ready(_reference(x_nhwc, base_w, base_b, dir_w, gate))

    # bf16 MXU operands (f32 accumulation) => compare against the full-f32
    # reference with a correspondingly relaxed tolerance.
    np.testing.assert_allclose(np.asarray(out), np.asarray(ref),
                               rtol=2e-2, atol=2e-2)
    print("KERNEL_OK")
</pallas_src>

<mosaic_0001>
module attributes {stable_mosaic.version = 11 : i64} {
  func.func @_magc_kernel(%arg0: i32, %arg1: memref<1x20x80xbf16, #tpu.memory_space<vmem>>, %arg2: memref<5x80x128xbf16, #tpu.memory_space<vmem>>, %arg3: memref<1x128xf32, #tpu.memory_space<vmem>>, %arg4: memref<1x16x128xf32, #tpu.memory_space<vmem>>, %arg5: memref<16x128xf32, #tpu.memory_space<vmem>>) attributes {dimension_semantics = [#tpu.dimension_semantics<parallel>], iteration_bounds = array<i64: 2>, scalar_prefetch = 0 : i64, scratch_operands = 1 : i64, tpu.core_type = #tpu.core_type<tc>, window_params = [{transform_indices = @transform_0, window_bounds = array<i64: 1, 20, 80>}, {pipeline_mode = #tpu.pipeline_mode<synchronous>, transform_indices = @transform_1, window_bounds = array<i64: 5, 80, 128>}, {pipeline_mode = #tpu.pipeline_mode<synchronous>, transform_indices = @transform_2, window_bounds = array<i64: 1, 128>}, {transform_indices = @transform_3, window_bounds = array<i64: 1, 16, 128>}]} {
    %c0 = arith.constant 0 : index
    %c0_0 = arith.constant 0 : index
    %c0_1 = arith.constant 0 : index
    %0 = vector.load %arg1[%c0, %c0_0, %c0_1] : memref<1x20x80xbf16, #tpu.memory_space<vmem>>, vector<1x20x80xbf16>
    %1 = vector.shape_cast %0 : vector<1x20x80xbf16> to vector<20x80xbf16>
    %2 = vector.extract_strided_slice %1 {offsets = [0, 0], sizes = [16, 80], strides = [1, 1]} : vector<20x80xbf16> to vector<16x80xbf16>
    %c0_2 = arith.constant 0 : index
    %c0_3 = arith.constant 0 : index
    %c0_4 = arith.constant 0 : index
    %3 = vector.load %arg2[%c0_2, %c0_3, %c0_4] : memref<5x80x128xbf16, #tpu.memory_space<vmem>>, vector<1x80x128xbf16>
    %4 = vector.shape_cast %3 : vector<1x80x128xbf16> to vector<80x128xbf16>
    %cst = arith.constant dense<0.000000e+00> : vector<16x128xf32>
    %5 = tpu.matmul %2, %4, %cst {dimension_numbers = #tpu.dot_dimension_numbers<[1], [0], [0], [1], [0, 0, 1, 1], [], []>} : vector<16x80xbf16>, vector<80x128xbf16>, vector<16x128xf32> -> vector<16x128xf32>
    %c0_5 = arith.constant 0 : index
    %c0_6 = arith.constant 0 : index
    %6 = vector.load %arg5[%c0_5, %c0_6] : memref<16x128xf32, #tpu.memory_space<vmem>>, vector<16x128xf32>
    tpu.vector_store %arg5[%c0_5, %c0_6], %5 {strides = array<i32>} : memref<16x128xf32, #tpu.memory_space<vmem>>, vector<16x128xf32>,
    %c0_7 = arith.constant 0 : index
    %c0_8 = arith.constant 0 : index
    %7 = vector.load %arg5[%c0_7, %c0_8] : memref<16x128xf32, #tpu.memory_space<vmem>>, vector<16x128xf32>
    %8 = vector.extract_strided_slice %1 {offsets = [1, 0], sizes = [16, 80], strides = [1, 1]} : vector<20x80xbf16> to vector<16x80xbf16>
    %c1 = arith.constant 1 : index
    %c0_9 = arith.constant 0 : index
    %c0_10 = arith.constant 0 : index
    %9 = vector.load %arg2[%c1, %c0_9, %c0_10] : memref<5x80x128xbf16, #tpu.memory_space<vmem>>, vector<1x80x128xbf16>
    %10 = vector.shape_cast %9 : vector<1x80x128xbf16> to vector<80x128xbf16>
    %cst_11 = arith.constant dense<0.000000e+00> : vector<16x128xf32>
    %11 = tpu.matmul %8, %10, %cst_11 {dimension_numbers = #tpu.dot_dimension_numbers<[1], [0], [0], [1], [0, 0, 1, 1], [], []>} : vector<16x80xbf16>, vector<80x128xbf16>, vector<16x128xf32> -> vector<16x128xf32>
    %12 = arith.addf %7, %11 : vector<16x128xf32>
    %c0_12 = arith.constant 0 : index
    %c0_13 = arith.constant 0 : index
    %13 = vector.load %arg5[%c0_12, %c0_13] : memref<16x128xf32, #tpu.memory_space<vmem>>, vector<16x128xf32>
    tpu.vector_store %arg5[%c0_12, %c0_13], %12 {strides = array<i32>} : memref<16x128xf32, #tpu.memory_space<vmem>>, vector<16x128xf32>,
    %c0_14 = arith.constant 0 : index
    %c0_15 = arith.constant 0 : index
    %14 = vector.load %arg5[%c0_14, %c0_15] : memref<16x128xf32, #tpu.memory_space<vmem>>, vector<16x128xf32>
    %15 = vector.extract_strided_slice %1 {offsets = [2, 0], sizes = [16, 80], strides = [1, 1]} : vector<20x80xbf16> to vector<16x80xbf16>
    %c2 = arith.constant 2 : index
    %c0_16 = arith.constant 0 : index
    %c0_17 = arith.constant 0 : index
    %16 = vector.load %arg2[%c2, %c0_16, %c0_17] : memref<5x80x128xbf16, #tpu.memory_space<vmem>>, vector<1x80x128xbf16>
    %17 = vector.shape_cast %16 : vector<1x80x128xbf16> to vector<80x128xbf16>
    %cst_18 = arith.constant dense<0.000000e+00> : vector<16x128xf32>
    %18 = tpu.matmul %15, %17, %cst_18 {dimension_numbers = #tpu.dot_dimension_numbers<[1], [0], [0], [1], [0, 0, 1, 1], [], []>} : vector<16x80xbf16>, vector<80x128xbf16>, vector<16x128xf32> -> vector<16x128xf32>
    %19 = arith.addf %14, %18 : vector<16x128xf32>
    %c0_19 = arith.constant 0 : index
    %c0_20 = arith.constant 0 : index
    %20 = vector.load %arg5[%c0_19, %c0_20] : memref<16x128xf32, #tpu.memory_space<vmem>>, vector<16x128xf32>
    tpu.vector_store %arg5[%c0_19, %c0_20], %19 {strides = array<i32>} : memref<16x128xf32, #tpu.memory_space<vmem>>, vector<16x128xf32>,
    %c0_21 = arith.constant 0 : index
    %c0_22 = arith.constant 0 : index
    %21 = vector.load %arg5[%c0_21, %c0_22] : memref<16x128xf32, #tpu.memory_space<vmem>>, vector<16x128xf32>
    %22 = vector.extract_strided_slice %1 {offsets = [3, 0], sizes = [16, 80], strides = [1, 1]} : vector<20x80xbf16> to vector<16x80xbf16>
    %c3 = arith.constant 3 : index
    %c0_23 = arith.constant 0 : index
    %c0_24 = arith.constant 0 : index
    %23 = vector.load %arg2[%c3, %c0_23, %c0_24] : memref<5x80x128xbf16, #tpu.memory_space<vmem>>, vector<1x80x128xbf16>
    %24 = vector.shape_cast %23 : vector<1x80x128xbf16> to vector<80x128xbf16>
    %cst_25 = arith.constant dense<0.000000e+00> : vector<16x128xf32>
    %25 = tpu.matmul %22, %24, %cst_25 {dimension_numbers = #tpu.dot_dimension_numbers<[1], [0], [0], [1], [0, 0, 1, 1], [], []>} : vector<16x80xbf16>, vector<80x128xbf16>, vector<16x128xf32> -> vector<16x128xf32>
    %26 = arith.addf %21, %25 : vector<16x128xf32>
    %c0_26 = arith.constant 0 : index
    %c0_27 = arith.constant 0 : index
    %27 = vector.load %arg5[%c0_26, %c0_27] : memref<16x128xf32, #tpu.memory_space<vmem>>, vector<16x128xf32>
    tpu.vector_store %arg5[%c0_26, %c0_27], %26 {strides = array<i32>} : memref<16x128xf32, #tpu.memory_space<vmem>>, vector<16x128xf32>,
    %c0_28 = arith.constant 0 : index
    %c0_29 = arith.constant 0 : index
    %28 = vector.load %arg5[%c0_28, %c0_29] : memref<16x128xf32, #tpu.memory_space<vmem>>, vector<16x128xf32>
    %29 = vector.extract_strided_slice %1 {offsets = [4, 0], sizes = [16, 80], strides = [1, 1]} : vector<20x80xbf16> to vector<16x80xbf16>
    %c4 = arith.constant 4 : index
    %c0_30 = arith.constant 0 : index
    %c0_31 = arith.constant 0 : index
    %30 = vector.load %arg2[%c4, %c0_30, %c0_31] : memref<5x80x128xbf16, #tpu.memory_space<vmem>>, vector<1x80x128xbf16>
    %31 = vector.shape_cast %30 : vector<1x80x128xbf16> to vector<80x128xbf16>
    %cst_32 = arith.constant dense<0.000000e+00> : vector<16x128xf32>
    %32 = tpu.matmul %29, %31, %cst_32 {dimension_numbers = #tpu.dot_dimension_numbers<[1], [0], [0], [1], [0, 0, 1, 1], [], []>} : vector<16x80xbf16>, vector<80x128xbf16>, vector<16x128xf32> -> vector<16x128xf32>
    %33 = arith.addf %28, %32 : vector<16x128xf32>
    %c0_33 = arith.constant 0 : index
    %c0_34 = arith.constant 0 : index
    %34 = vector.load %arg5[%c0_33, %c0_34] : memref<16x128xf32, #tpu.memory_space<vmem>>, vector<16x128xf32>
    tpu.vector_store %arg5[%c0_33, %c0_34], %33 {strides = array<i32>} : memref<16x128xf32, #tpu.memory_space<vmem>>, vector<16x128xf32>,
    %c0_35 = arith.constant 0 : index
    %c0_36 = arith.constant 0 : index
    %35 = vector.load %arg5[%c0_35, %c0_36] : memref<16x128xf32, #tpu.memory_space<vmem>>, vector<16x128xf32>
    %c0_37 = arith.constant 0 : index
    %c0_38 = arith.constant 0 : index
    %36 = vector.load %arg3[%c0_37, %c0_38] : memref<1x128xf32, #tpu.memory_space<vmem>>, vector<1x128xf32>
    %37 = vector.broadcast %36 : vector<1x128xf32> to vector<16x128xf32>
    %38 = arith.addf %35, %37 : vector<16x128xf32>
    %cst_39 = arith.constant 0.000000e+00 : f32
    %39 = vector.broadcast %cst_39 : f32 to vector<16x128xf32>
    %40 = arith.maximumf %38, %39 : vector<16x128xf32>
    %c0_40 = arith.constant 0 : index
    %c0_41 = arith.constant 0 : index
    %c0_42 = arith.constant 0 : index
    %41 = vector.load %arg4[%c0_40, %c0_41, %c0_42] : memref<1x16x128xf32, #tpu.memory_space<vmem>>, vector<1x16x128xf32>
    %42 = vector.shape_cast %41 : vector<1x16x128xf32> to vector<16x128xf32>
    %43 = vector.shape_cast %40 : vector<16x128xf32> to vector<1x16x128xf32>
    tpu.vector_store %arg4[%c0_40, %c0_41, %c0_42], %43 {strides = array<i32>} : memref<1x16x128xf32, #tpu.memory_space<vmem>>, vector<1x16x128xf32>,
    return
  }
  func.func @transform_0(%arg0: i32) -> (i32, i32, i32) {
    %c0_i32 = arith.constant 0 : i32
    %c0_i32_0 = arith.constant 0 : i32
    %c0_i32_1 = arith.constant 0 : i32
    return %arg0, %c0_i32, %c0_i32_0 : i32, i32, i32
  }
  func.func @transform_1(%arg0: i32) -> (i32, i32, i32) {
    %c0_i32 = arith.constant 0 : i32
    %c0_i32_0 = arith.constant 0 : i32
    %c0_i32_1 = arith.constant 0 : i32
    %c0_i32_2 = arith.constant 0 : i32
    return %c0_i32, %c0_i32_0, %c0_i32_1 : i32, i32, i32
  }
  func.func @transform_2(%arg0: i32) -> (i32, i32) {
    %c0_i32 = arith.constant 0 : i32
    %c0_i32_0 = arith.constant 0 : i32
    %c0_i32_1 = arith.constant 0 : i32
    return %c0_i32, %c0_i32_0 : i32, i32
  }
  func.func @transform_3(%arg0: i32) -> (i32, i32, i32) {
    %c0_i32 = arith.constant 0 : i32
    %c0_i32_0 = arith.constant 0 : i32
    %c0_i32_1 = arith.constant 0 : i32
    return %arg0, %c0_i32, %c0_i32_0 : i32, i32, i32
  }
}

</mosaic_0001>

<llo_original>
// kernel: tpu_custom_call.1
$region0: #{tpu_custom_call.1}
  #allocation0 [shape = 'u32[]', space=smem, size = 0x4, offset = 0x4, fixed_abs, tag = 'smem constant byte address 0x4 - core index']
  #allocation1 [shape = 'u32[144,128]{1,0:T(1,128)}', space=vmem, size = 0x12000, scoped, tag = 'internal scratch']
  #allocation2 [shape = 'f32[16,128]{1,0:T(8,128)}', space=vmem, size = 0x2000, scoped, tag = 'scratch operand']
  %s0 = inlined_call_operand.vmem [shape: bf16[2,20,80], index: 0, kind: input, shape index: {}]
  %s1 = inlined_call_operand.hbm [shape: bf16[5,80,128], index: 1, kind: input, shape index: {}]
  %s2 = inlined_call_operand.vmem [shape: f32[1,128], index: 2, kind: input, shape index: {}]
  %s3 = inlined_call_operand.hbm [shape: f32[2,16,128], index: 3, kind: output, shape index: {}]
  %s4 = sld [smem:[#allocation0]]
  $region49: #{tpu_custom_call.1} parent=0
    _
  %s6 = ssub.s32 1, %s4
  %s7 = scalar_select 0, %s6, %s4
  $region1: #{tpu_custom_call.1} parent=0
    #allocation3 [shape = 'u8[102400]{0}', space=vmem, size = 0x19000, scoped, tag = 'input window, operand 1, single buffered']
    #allocation4 [shape = 's32[2]{0}', space=sflag, size = 0x8, scoped, tag = 'scoped memory for tpu_custom_call.1']
    #allocation5 [shape = 's32[2]{0}', space=sflag, size = 0x8, scoped, tag = 'scoped memory for tpu_custom_call.1']
    #allocation6 [shape = 'u8[16384]{0}', space=vmem, size = 0x4000, scoped, tag = 'output window, operand 0']
    %8 = vsyncpa [#allocation4], 0
    %9 = vsyncpa [#allocation5], 0
    %s10 = scalar_lea.sflag [#allocation5], 1
    %11 = vsyncpa %s10, 0
    loop: start=0, step=1, limit=4
    $region2: #{tpu_custom_call.1} parent=1 // loop_pre_header
      _
    $region3: #{tpu_custom_call.1} parent=1 // loop_header
      %s13 = sphi 0, %s17
      %p14 = scmp.ge.s32.totalorder %s13, 4
      %s23 = sphi 0, %s25
      %s26 = sphi 0, %s23
      %s27 = sphi 0, %s26
      %s43 = sphi 0, %s27
      %s47 = sphi 0, %s47
      %s49 = sphi 0, %s47
      %s50 = sphi 0, %s49
      %s64 = sphi 0, %s50
      %s68 = sphi 0, %s68
      %s70 = sphi 0, %s68
      %s71 = sphi 0, %s70
      %s85 = sphi 0, %s71
      %s91 = sphi 0, %s93
      %s94 = sphi 0, %s91
      %s95 = sphi 0, %s94
      %s111 = sphi 0, %s95
    $region4: #{tpu_custom_call.1} parent=1 // loop_header_branch
      %16 = sbr.rel (%p14) target = $region8
    $region5: #{tpu_custom_call.1} parent=1 // loop_body
      %s18 = ssub.s32 %s13, 1
      %s19 = ssub.s32 %s13, 2
      %s20 = sadd.s32 %s13, 1
      %s21 = ssub.s32 %s13, %s20
      %p22 = scmp.eq.s32.totalorder %s21, 0
      %s24 = sadd.s32 %s23, 1
      %s25 = scalar_select %p22, %s23, %s24
      %p28 = pneg %p22
      %p29 = scmp.eq.s32.totalorder %s13, 1
      %p30 = por %p28, %p29
      %p31 = scmp.ne.s32.totalorder %s23, %s26
      %p32 = scmp.eq.s32.totalorder %s13, 0
      %p33 = por %p31, %p32
      %p34 = scmp.ne.s32.totalorder %s23, %s26
      %p35 = scmp.eq.s32.totalorder %s18, 1
      %p36 = por %p34, %p35
      %p37 = scmp.ne.s32.totalorder %s26, %s27
      %p38 = scmp.eq.s32.totalorder %s18, 0
      %p39 = por %p37, %p38
      %p40 = scmp.ne.s32.totalorder %s26, %s27
      %p41 = scmp.eq.s32.totalorder %s19, 1
      %p42 = por %p40, %p41
      %p44 = scmp.ne.s32.totalorder %s27, %s43
      %p45 = scmp.eq.s32.totalorder %s19, 0
      %p46 = por %p44, %p45
      %s48 = sadd.s32 %s47, 1
      %p51 = scmp.eq.s32.totalorder %s13, 1
      %p52 = scmp.ne.s32.totalorder %s47, %s49
      %p53 = scmp.eq.s32.totalorder %s13, 0
      %p54 = por %p52, %p53
      %p55 = scmp.ne.s32.totalorder %s47, %s49
      %p56 = scmp.eq.s32.totalorder %s18, 1
      %p57 = por %p55, %p56
      %p58 = scmp.ne.s32.totalorder %s49, %s50
      %p59 = scmp.eq.s32.totalorder %s18, 0
      %p60 = por %p58, %p59
      %p61 = scmp.ne.s32.totalorder %s49, %s50
      %p62 = scmp.eq.s32.totalorder %s19, 1
      %p63 = por %p61, %p62
      %p65 = scmp.ne.s32.totalorder %s50, %s64
      %p66 = scmp.eq.s32.totalorder %s19, 0
      %p67 = por %p65, %p66
      %s69 = sadd.s32 %s68, 1
      %p72 = scmp.eq.s32.totalorder %s13, 1
      %p73 = scmp.ne.s32.totalorder %s68, %s70
      %p74 = scmp.eq.s32.totalorder %s13, 0
      %p75 = por %p73, %p74
      %p76 = scmp.ne.s32.totalorder %s68, %s70
      %p77 = scmp.eq.s32.totalorder %s18, 1
      %p78 = por %p76, %p77
      %p79 = scmp.ne.s32.totalorder %s70, %s71
      %p80 = scmp.eq.s32.totalorder %s18, 0
      %p81 = por %p79, %p80
      %p82 = scmp.ne.s32.totalorder %s70, %s71
      %p83 = scmp.eq.s32.totalorder %s19, 1
      %p84 = por %p82, %p83
      %p86 = scmp.ne.s32.totalorder %s71, %s85
      %p87 = scmp.eq.s32.totalorder %s19, 0
      %p88 = por %p86, %p87
      %s89 = ssub.s32 %s13, %s20
      %p90 = scmp.eq.s32.totalorder %s89, 0
      %s92 = sadd.s32 %s91, 1
      %s93 = scalar_select %p90, %s91, %s92
      %p96 = pneg %p90
      %p97 = scmp.eq.s32.totalorder %s13, 1
      %p98 = por %p96, %p97
      %p99 = scmp.ne.s32.totalorder %s91, %s94
      %p100 = scmp.eq.s32.totalorder %s13, 0
      %p101 = por %p99, %p100
      %p102 = scmp.ne.s32.totalorder %s91, %s94
      %p103 = scmp.eq.s32.totalorder %s18, 1
      %p104 = por %p102, %p103
      %p105 = scmp.ne.s32.totalorder %s94, %s95
      %p106 = scmp.eq.s32.totalorder %s18, 0
      %p107 = por %p105, %p106
      %p108 = scmp.ne.s32.totalorder %s94, %s95
      %p109 = scmp.eq.s32.totalorder %s19, 1
      %p110 = por %p108, %p109
      %p112 = scmp.ne.s32.totalorder %s95, %s111
      %p113 = scmp.eq.s32.totalorder %s19, 0
      %p114 = por %p112, %p113
      %p115 = scmp.le.s32.totalorder 1, %s13
      %p116 = scmp.lt.s32.totalorder %s13, 3
      %p117 = pnand %p115, %p116
      %p118 = pneg %p117
      // Predicated region
      $region9: #{tpu_custom_call.1} parent=5 // pred_check
        _
      $region10: #{tpu_custom_call.1} parent=5 // pred_check_branch
        %120 = sbr.rel (%p117) target = $region12
      $region11: #{tpu_custom_call.1} parent=5 // pred_region
        %s121 = ssub.s32 %s13, 1
        // Predicated region
        $region13: #{tpu_custom_call.1} parent=11 // pred_check
          %p122 = pneg %p60
        $region14: #{tpu_custom_call.1} parent=11 // pred_check_branch
          %124 = sbr.rel (%p122) target = $region16
        $region15: #{tpu_custom_call.1} parent=11 // pred_region
          %s126 = ssub.s32 3200, 3200
          %127 = vsyncadd [#allocation4], %s126
          %s128 = sshll.u32 [#allocation3], 4
          %s129 = int_to_ptr.vmem [resolvable:$true] %s128
          %134 = dma.hbm_to_vmem [thread:$0]  %s1, 3200, %s129, [#allocation4], 64, 64, 4
        $region16: #{tpu_custom_call.1} parent=11 // pred_fallthru
          _
        // Predicated region
        $region17: #{tpu_custom_call.1} parent=11 // pred_check
          %p135 = pneg %p81
        $region18: #{tpu_custom_call.1} parent=11 // pred_check_branch
          %137 = sbr.rel (%p135) target = $region20
        $region19: #{tpu_custom_call.1} parent=11 // pred_region
          _
        $region20: #{tpu_custom_call.1} parent=11 // pred_fallthru
          _
      $region12: #{tpu_custom_call.1} parent=5 // pred_fallthru
        _
      %p138 = scmp.lt.s32.totalorder %s13, 2
      // Predicated region
      $region21: #{tpu_custom_call.1} parent=5 // pred_check
        %p139 = pneg %p138
      $region22: #{tpu_custom_call.1} parent=5 // pred_check_branch
        %141 = sbr.rel (%p139) target = $region24
      $region23: #{tpu_custom_call.1} parent=5 // pred_region
        // Predicated region
        $region25: #{tpu_custom_call.1} parent=23 // pred_check
          %p142 = pneg %p33
        $region26: #{tpu_custom_call.1} parent=23 // pred_check_branch
          %144 = sbr.rel (%p142) target = $region28
        $region27: #{tpu_custom_call.1} parent=23 // pred_region
          %p145 = scmp.lt.s32.totalorder %s13, 1
          %s146 = scalar_select %p145, %s13, 1
          %s147 = smul.addr %s146, 3
          %s148 = smul.addr %s147, 4
          %s149 = scalar_lea.vmem %s0, %s148
        $region28: #{tpu_custom_call.1} parent=23 // pred_fallthru
          _
      $region24: #{tpu_custom_call.1} parent=5 // pred_fallthru
        _
      %p150 = scmp.le.s32.totalorder 1, %s13
      %p151 = scmp.lt.s32.totalorder %s13, 3
      %p152 = pnand %p150, %p151
      %p153 = pneg %p152
      // Predicated region
      $region29: #{tpu_custom_call.1} parent=5 // pred_check
        _
      $region30: #{tpu_custom_call.1} parent=5 // pred_check_branch
        %155 = sbr.rel (%p152) target = $region32
      $region31: #{tpu_custom_call.1} parent=5 // pred_region
        %s156 = ssub.s32 %s13, 1
        // Predicated region
        $region33: #{tpu_custom_call.1} parent=31 // pred_check
          %p157 = pneg %p60
        $region34: #{tpu_custom_call.1} parent=31 // pred_check_branch
          %159 = sbr.rel (%p157) target = $region36
        $region35: #{tpu_custom_call.1} parent=31 // pred_region
          %160 = dma.done [#allocation4], 3200
        $region36: #{tpu_custom_call.1} parent=31 // pred_fallthru
          _
        %p161 = scmp.lt.s32.totalorder %s18, 1
        %s162 = scalar_select %p161, %s18, 1
        %s163 = smul.addr %s162, 3
        %s164 = smul.addr %s163, 4
        %s165 = scalar_lea.vmem %s0, %s164
        %p166 = pneg %p39
        %p167 = pneg %p36
        %p168 = pneg %p60
        %p169 = pneg %p57
        %p170 = pneg %p81
        %p171 = pneg %p78
        %p172 = pneg %p107
        %p173 = pneg %p104
        %s174 = sand.u32 %s94, 1
        %s175 = scalar_lea.sflag [#allocation5], %s174
        %s176 = sand.u32 %s94, 1
        %s177 = smul.addr %s176, 16
        %s178 = scalar_lea.vmem [#allocation6], %s177
        %p179 = scmp.lt.s32.totalorder %s18, 1
        %s180 = scalar_select %p179, %s18, 1
        %s181 = smul.addr %s180, 3
        %s182 = smul.addr %s181, 4
        %s183 = scalar_lea.vmem %s0, %s182
        %v185 = vld [vmem:[%s183] sm:$0xf]
        %v186 = vld [vmem:[%s183 + $0x4] sm:$0xf]
        %v187 = vld [vmem:[%s183 + $0x8] sm:$0x3]
        %v188 = vld [vmem:[#allocation3] sm:$0xf]
        %v189 = vld [vmem:[#allocation3 + $0x4] sm:$0xf]
        %v190 = vld [vmem:[#allocation3 + $0x8] sm:$0xf]
        %v191 = vld [vmem:[#allocation3 + $0xc] sm:$0xf]
        %v192 = vld [vmem:[#allocation3 + $0x10] sm:$0xf]
        %v193 = vld [vmem:[#allocation3 + $0x14] sm:$0xf]
        %v194 = vld [vmem:[#allocation3 + $0x18] sm:$0xf]
        %v195 = vld [vmem:[#allocation3 + $0x1c] sm:$0xf]
        %v196 = vld [vmem:[#allocation3 + $0x20] sm:$0xf]
        %v197 = vld [vmem:[#allocation3 + $0x24] sm:$0xf]
        %v200 = vunpack.c.l.b16 %v185
        %v201 = vunpack.c.l.b16 %v186
        %v202 = vpack.c.b16 %v201, %v200
        %v213 = vunpack.c.l.b16 %v188
        %v214 = vunpack.c.l.b16 %v189
        %v215 = vunpack.c.l.b16 %v190
        %v216 = vunpack.c.l.b16 %v191
        %v217 = vunpack.c.l.b16 %v192
        %v218 = vunpack.c.l.b16 %v193
        %v219 = vunpack.c.l.b16 %v194
        %v220 = vunpack.c.l.b16 %v195
        %v221 = vunpack.c.l.b16 %v196
        %v222 = vunpack.c.l.b16 %v197
        %v223 = vpack.c.b16 %v214, %v213
        %v224 = vpack.c.b16 %v216, %v215
        %v225 = vpack.c.b16 %v218, %v217
        %v226 = vpack.c.b16 %v220, %v219
        %v227 = vpack.c.b16 %v222, %v221
        %vm233 = vcmask 654336
        %v235 = vsel %vm233, %v202, 0
        %237 = vmatprep.subr.bf16.mxu0 0
        %238 = vmatpush1.bf16.msra.mxu0 %v223
        %239 = vmatprep.subr.bf16.mxu0 0
        %240 = vmatpush1.bf16.msra.mxu0 %v224
        %241 = vmatprep.subr.bf16.mxu0 0
        %242 = vmatpush1.bf16.msra.mxu0 %v225
        %243 = vmatprep.subr.bf16.mxu0 0
        %244 = vmatpush1.bf16.msra.mxu0 %v226
        %245 = vmatprep.subr.bf16.mxu0 0
        %246 = vmatpush1.bf16.msra.mxu0 %v227
        %247 = vmatprep.subr.bf16.mxu0 0
        %248 = vmatpush1.bf16.msra.mxu0 0
        %249 = vmatprep.subr.bf16.mxu0 0
        %250 = vmatpush1.bf16.msra.mxu0 0
        %251 = vmatprep.subr.bf16.mxu0 0
        %252 = vmatpush1.bf16.msra.mxu0 0
        %253 = vmatprep.subr.bf16.mxu0 0
        %254 = vmatpush1.bf16.msra.mxu0 0
        %255 = vmatprep.subr.bf16.mxu0 0
        %256 = vmatpush1.bf16.msra.mxu0 0
        %257 = vmatprep.subr.bf16.mxu0 0
        %258 = vmatpush1.bf16.msra.mxu0 0
        %259 = vmatprep.subr.bf16.mxu0 0
        %260 = vmatpush1.bf16.msra.mxu0 0
        %261 = vmatprep.subr.bf16.mxu0 0
        %262 = vmatpush1.bf16.msra.mxu0 0
        %263 = vmatprep.subr.bf16.mxu0 0
        %264 = vmatpush1.bf16.msra.mxu0 0
        %265 = vmatprep.subr.bf16.mxu0 0
        %266 = vmatpush1.bf16.msra.mxu0 0
        %267 = vmatprep.subr.bf16.mxu0 0
        %268 = vmatpush1.bf16.msra.mxu0 0
        %269 = vmatprep.mubr.bf16.mxu0 0
        %270 = vmatmul.mubr.bf16.gmra.mrb[0].mxu0 %v235
        %v271 = vpop.f32.mrb[0].mxu0
        %v272 = vadd.f32 0.0, %v271
        %v273 = vpop.f32.mrb[0].mxu0
        %v274 = vpop.f32.mrb[0].mxu0
        %v275 = vadd.f32 0.0, %v274
        %v276 = vpop.f32.mrb[0].mxu0
        %277 = vdwg.mxu0
        %278 = vst [vmem:[#allocation2] sm:$0xff] %v272
        %279 = vst [vmem:[#allocation2 + $0x8] sm:$0xff] %v275
        %v280 = vld [vmem:[#allocation2] sm:$0xff]
        %v281 = vld [vmem:[#allocation2 + $0x8] sm:$0xff]
        %s282 = scalar_lea.vmem [#allocation3], 40
        %v283 = vld [vmem:[%s282] sm:$0xf]
        %v284 = vld [vmem:[%s282 + $0x4] sm:$0xf]
        %v285 = vld [vmem:[%s282 + $0x8] sm:$0xf]
        %v286 = vld [vmem:[%s282 + $0xc] sm:$0xf]
        %v287 = vld [vmem:[%s282 + $0x10] sm:$0xf]
        %v288 = vld [vmem:[%s282 + $0x14] sm:$0xf]
        %v289 = vld [vmem:[%s282 + $0x18] sm:$0xf]
        %v290 = vld [vmem:[%s282 + $0x1c] sm:$0xf]
        %v291 = vld [vmem:[%s282 + $0x20] sm:$0xf]
        %v292 = vld [vmem:[%s282 + $0x24] sm:$0xf]
        %v294 = vunpack.c.l.b16 %v187
        %v295 = vpack.c.b16 %v294, %v294
        %vm296 = vsmask.f32 7424
        %v297 = vshrl.u32 %v202, 16
        %v299 = vshll.u32 %v202, 16
        %v301 = vrot.slane %v299, 1
        %v302 = vor.u32 %v297, %v301
        %v304 = vshll.u32 %v295, 16
        %v306 = vrot.slane %v304, 1
        %v307 = vsel %vm296, %v302, %v306
        %v318 = vunpack.c.l.b16 %v283
        %v319 = vunpack.c.l.b16 %v284
        %v320 = vunpack.c.l.b16 %v285
        %v321 = vunpack.c.l.b16 %v286
        %v322 = vunpack.c.l.b16 %v287
        %v323 = vunpack.c.l.b16 %v288
        %v324 = vunpack.c.l.b16 %v289
        %v325 = vunpack.c.l.b16 %v290
        %v326 = vunpack.c.l.b16 %v291
        %v327 = vunpack.c.l.b16 %v292
        %v328 = vpack.c.b16 %v319, %v318
        %v329 = vpack.c.b16 %v321, %v320
        %v330 = vpack.c.b16 %v323, %v322
        %v331 = vpack.c.b16 %v325, %v324
        %v332 = vpack.c.b16 %v327, %v326
        %v339 = vsel %vm233, %v307, 0
        %341 = vmatprep.subr.bf16.mxu0 0
        %342 = vmatpush1.bf16.msra.mxu0 %v328
        %343 = vmatprep.subr.bf16.mxu0 0
        %344 = vmatpush1.bf16.msra.mxu0 %v329
        %345 = vmatprep.subr.bf16.mxu0 0
        %346 = vmatpush1.bf16.msra.mxu0 %v330
        %347 = vmatprep.subr.bf16.mxu0 0
        %348 = vmatpush1.bf16.msra.mxu0 %v331
        %349 = vmatprep.subr.bf16.mxu0 0
        %350 = vmatpush1.bf16.msra.mxu0 %v332
        %351 = vmatprep.subr.bf16.mxu0 0
        %352 = vmatpush1.bf16.msra.mxu0 0
        %353 = vmatprep.subr.bf16.mxu0 0
        %354 = vmatpush1.bf16.msra.mxu0 0
        %355 = vmatprep.subr.bf16.mxu0 0
        %356 = vmatpush1.bf16.msra.mxu0 0
        %357 = vmatprep.subr.bf16.mxu0 0
        %358 = vmatpush1.bf16.msra.mxu0 0
        %359 = vmatprep.subr.bf16.mxu0 0
        %360 = vmatpush1.bf16.msra.mxu0 0
        %361 = vmatprep.subr.bf16.mxu0 0
        %362 = vmatpush1.bf16.msra.mxu0 0
        %363 = vmatprep.subr.bf16.mxu0 0
        %364 = vmatpush1.bf16.msra.mxu0 0
        %365 = vmatprep.subr.bf16.mxu0 0
        %366 = vmatpush1.bf16.msra.mxu0 0
        %367 = vmatprep.subr.bf16.mxu0 0
        %368 = vmatpush1.bf16.msra.mxu0 0
        %369 = vmatprep.subr.bf16.mxu0 0
        %370 = vmatpush1.bf16.msra.mxu0 0
        %371 = vmatprep.subr.bf16.mxu0 0
        %372 = vmatpush1.bf16.msra.mxu0 0
        %373 = vmatprep.mubr.bf16.mxu0 0
        %374 = vmatmul.mubr.bf16.gmra.mrb[0].mxu0 %v339
        %v375 = vpop.f32.mrb[0].mxu0
        %v376 = vadd.f32 0.0, %v375
        %v377 = vpop.f32.mrb[0].mxu0
        %v378 = vpop.f32.mrb[0].mxu0
        %v379 = vadd.f32 0.0, %v378
        %v380 = vpop.f32.mrb[0].mxu0
        %381 = vdwg.mxu0
        %v382 = vadd.f32 %v280, %v376
        %v383 = vadd.f32 %v281, %v379
        %384 = vst [vmem:[#allocation2] sm:$0xff] %v382
        %385 = vst [vmem:[#allocation2 + $0x8] sm:$0xff] %v383
        %v386 = vld [vmem:[#allocation2] sm:$0xff]
        %v387 = vld [vmem:[#allocation2 + $0x8] sm:$0xff]
        %s388 = scalar_lea.vmem [#allocation3], 80
        %v389 = vld [vmem:[%s388] sm:$0xf]
        %v390 = vld [vmem:[%s388 + $0x4] sm:$0xf]
        %v391 = vld [vmem:[%s388 + $0x8] sm:$0xf]
        %v392 = vld [vmem:[%s388 + $0xc] sm:$0xf]
        %v393 = vld [vmem:[%s388 + $0x10] sm:$0xf]
        %v394 = vld [vmem:[%s388 + $0x14] sm:$0xf]
        %v395 = vld [vmem:[%s388 + $0x18] sm:$0xf]
        %v396 = vld [vmem:[%s388 + $0x1c] sm:$0xf]
        %v397 = vld [vmem:[%s388 + $0x20] sm:$0xf]
        %v398 = vld [vmem:[%s388 + $0x24] sm:$0xf]
        %vm399 = vcmask 1046528
        %v400 = vrot.slane %v202, 1
        %v401 = vrot.slane %v295, 1
        %v402 = vsel %vm399, %v400, %v401
        %v413 = vunpack.c.l.b16 %v389
        %v414 = vunpack.c.l.b16 %v390
        %v415 = vunpack.c.l.b16 %v391
        %v416 = vunpack.c.l.b16 %v392
        %v417 = vunpack.c.l.b16 %v393
        %v418 = vunpack.c.l.b16 %v394
        %v419 = vunpack.c.l.b16 %v395
        %v420 = vunpack.c.l.b16 %v396
        %v421 = vunpack.c.l.b16 %v397
        %v422 = vunpack.c.l.b16 %v398
        %v423 = vpack.c.b16 %v414, %v413
        %v424 = vpack.c.b16 %v416, %v415
        %v425 = vpack.c.b16 %v418, %v417
        %v426 = vpack.c.b16 %v420, %v419
        %v427 = vpack.c.b16 %v422, %v421
        %v434 = vsel %vm233, %v402, 0
        %436 = vmatprep.subr.bf16.mxu0 0
        %437 = vmatpush1.bf16.msra.mxu0 %v423
        %438 = vmatprep.subr.bf16.mxu0 0
        %439 = vmatpush1.bf16.msra.mxu0 %v424
        %440 = vmatprep.subr.bf16.mxu0 0
        %441 = vmatpush1.bf16.msra.mxu0 %v425
        %442 = vmatprep.subr.bf16.mxu0 0
        %443 = vmatpush1.bf16.msra.mxu0 %v426
        %444 = vmatprep.subr.bf16.mxu0 0
        %445 = vmatpush1.bf16.msra.mxu0 %v427
        %446 = vmatprep.subr.bf16.mxu0 0
        %447 = vmatpush1.bf16.msra.mxu0 0
        %448 = vmatprep.subr.bf16.mxu0 0
        %449 = vmatpush1.bf16.msra.mxu0 0
        %450 = vmatprep.subr.bf16.mxu0 0
        %451 = vmatpush1.bf16.msra.mxu0 0
        %452 = vmatprep.subr.bf16.mxu0 0
        %453 = vmatpush1.bf16.msra.mxu0 0
        %454 = vmatprep.subr.bf16.mxu0 0
        %455 = vmatpush1.bf16.msra.mxu0 0
        %456 = vmatprep.subr.bf16.mxu0 0
        %457 = vmatpush1.bf16.msra.mxu0 0
        %458 = vmatprep.subr.bf16.mxu0 0
        %459 = vmatpush1.bf16.msra.mxu0 0
        %460 = vmatprep.subr.bf16.mxu0 0
        %461 = vmatpush1.bf16.msra.mxu0 0
        %462 = vmatprep.subr.bf16.mxu0 0
        %463 = vmatpush1.bf16.msra.mxu0 0
        %464 = vmatprep.subr.bf16.mxu0 0
        %465 = vmatpush1.bf16.msra.mxu0 0
        %466 = vmatprep.subr.bf16.mxu0 0
        %467 = vmatpush1.bf16.msra.mxu0 0
        %468 = vmatprep.mubr.bf16.mxu0 0
        %469 = vmatmul.mubr.bf16.gmra.mrb[0].mxu0 %v434
        %v470 = vpop.f32.mrb[0].mxu0
        %v471 = vadd.f32 0.0, %v470
        %v472 = vpop.f32.mrb[0].mxu0
        %v473 = vpop.f32.mrb[0].mxu0
        %v474 = vadd.f32 0.0, %v473
        %v475 = vpop.f32.mrb[0].mxu0
        %476 = vdwg.mxu0
        %v477 = vadd.f32 %v386, %v471
        %v478 = vadd.f32 %v387, %v474
        %479 = vst [vmem:[#allocation2] sm:$0xff] %v477
        %480 = vst [vmem:[#allocation2 + $0x8] sm:$0xff] %v478
        %v481 = vld [vmem:[#allocation2] sm:$0xff]
        %v482 = vld [vmem:[#allocation2 + $0x8] sm:$0xff]
        %s483 = scalar_lea.vmem [#allocation3], 120
        %v484 = vld [vmem:[%s483] sm:$0xf]
        %v485 = vld [vmem:[%s483 + $0x4] sm:$0xf]
        %v486 = vld [vmem:[%s483 + $0x8] sm:$0xf]
        %v487 = vld [vmem:[%s483 + $0xc] sm:$0xf]
        %v488 = vld [vmem:[%s483 + $0x10] sm:$0xf]
        %v489 = vld [vmem:[%s483 + $0x14] sm:$0xf]
        %v490 = vld [vmem:[%s483 + $0x18] sm:$0xf]
        %v491 = vld [vmem:[%s483 + $0x1c] sm:$0xf]
        %v492 = vld [vmem:[%s483 + $0x20] sm:$0xf]
        %v493 = vld [vmem:[%s483 + $0x24] sm:$0xf]
        %vm494 = vsmask.f32 6400
        %v495 = vrot.slane %v297, 1
        %v496 = vrot.slane %v299, 2
        %v497 = vor.u32 %v495, %v496
        %v498 = vshrl.u32 %v295, 16
        %v500 = vrot.slane %v498, 1
        %v501 = vrot.slane %v304, 2
        %v502 = vor.u32 %v500, %v501
        %v503 = vsel %vm494, %v497, %v502
        %v514 = vunpack.c.l.b16 %v484
        %v515 = vunpack.c.l.b16 %v485
        %v516 = vunpack.c.l.b16 %v486
        %v517 = vunpack.c.l.b16 %v487
        %v518 = vunpack.c.l.b16 %v488
        %v519 = vunpack.c.l.b16 %v489
        %v520 = vunpack.c.l.b16 %v490
        %v521 = vunpack.c.l.b16 %v491
        %v522 = vunpack.c.l.b16 %v492
        %v523 = vunpack.c.l.b16 %v493
        %v524 = vpack.c.b16 %v515, %v514
        %v525 = vpack.c.b16 %v517, %v516
        %v526 = vpack.c.b16 %v519, %v518
        %v527 = vpack.c.b16 %v521, %v520
        %v528 = vpack.c.b16 %v523, %v522
        %v535 = vsel %vm233, %v503, 0
        %537 = vmatprep.subr.bf16.mxu0 0
        %538 = vmatpush1.bf16.msra.mxu0 %v524
        %539 = vmatprep.subr.bf16.mxu0 0
        %540 = vmatpush1.bf16.msra.mxu0 %v525
        %541 = vmatprep.subr.bf16.mxu0 0
        %542 = vmatpush1.bf16.msra.mxu0 %v526
        %543 = vmatprep.subr.bf16.mxu0 0
        %544 = vmatpush1.bf16.msra.mxu0 %v527
        %545 = vmatprep.subr.bf16.mxu0 0
        %546 = vmatpush1.bf16.msra.mxu0 %v528
        %547 = vmatprep.subr.bf16.mxu0 0
        %548 = vmatpush1.bf16.msra.mxu0 0
        %549 = vmatprep.subr.bf16.mxu0 0
        %550 = vmatpush1.bf16.msra.mxu0 0
        %551 = vmatprep.subr.bf16.mxu0 0
        %552 = vmatpush1.bf16.msra.mxu0 0
        %553 = vmatprep.subr.bf16.mxu0 0
        %554 = vmatpush1.bf16.msra.mxu0 0
        %555 = vmatprep.subr.bf16.mxu0 0
        %556 = vmatpush1.bf16.msra.mxu0 0
        %557 = vmatprep.subr.bf16.mxu0 0
        %558 = vmatpush1.bf16.msra.mxu0 0
        %559 = vmatprep.subr.bf16.mxu0 0
        %560 = vmatpush1.bf16.msra.mxu0 0
        %561 = vmatprep.subr.bf16.mxu0 0
        %562 = vmatpush1.bf16.msra.mxu0 0
        %563 = vmatprep.subr.bf16.mxu0 0
        %564 = vmatpush1.bf16.msra.mxu0 0
        %565 = vmatprep.subr.bf16.mxu0 0
        %566 = vmatpush1.bf16.msra.mxu0 0
        %567 = vmatprep.subr.bf16.mxu0 0
        %568 = vmatpush1.bf16.msra.mxu0 0
        %569 = vmatprep.mubr.bf16.mxu0 0
        %570 = vmatmul.mubr.bf16.gmra.mrb[0].mxu0 %v535
        %v571 = vpop.f32.mrb[0].mxu0
        %v572 = vadd.f32 0.0, %v571
        %v573 = vpop.f32.mrb[0].mxu0
        %v574 = vpop.f32.mrb[0].mxu0
        %v575 = vadd.f32 0.0, %v574
        %v576 = vpop.f32.mrb[0].mxu0
        %577 = vdwg.mxu0
        %v578 = vadd.f32 %v481, %v572
        %v579 = vadd.f32 %v482, %v575
        %580 = vst [vmem:[#allocation2] sm:$0xff] %v578
        %581 = vst [vmem:[#allocation2 + $0x8] sm:$0xff] %v579
        %v582 = vld [vmem:[#allocation2] sm:$0xff]
        %v583 = vld [vmem:[#allocation2 + $0x8] sm:$0xff]
        %s584 = scalar_lea.vmem [#allocation3], 160
        %v585 = vld [vmem:[%s584] sm:$0xf]
        %v586 = vld [vmem:[%s584 + $0x4] sm:$0xf]
        %v587 = vld [vmem:[%s584 + $0x8] sm:$0xf]
        %v588 = vld [vmem:[%s584 + $0xc] sm:$0xf]
        %v589 = vld [vmem:[%s584 + $0x10] sm:$0xf]
        %v590 = vld [vmem:[%s584 + $0x14] sm:$0xf]
        %v591 = vld [vmem:[%s584 + $0x18] sm:$0xf]
        %v592 = vld [vmem:[%s584 + $0x1c] sm:$0xf]
        %v593 = vld [vmem:[%s584 + $0x20] sm:$0xf]
        %v594 = vld [vmem:[%s584 + $0x24] sm:$0xf]
        %vm595 = vcmask 1045504
        %v596 = vrot.slane %v202, 2
        %v597 = vrot.slane %v295, 2
        %v598 = vsel %vm595, %v596, %v597
        %v609 = vunpack.c.l.b16 %v585
        %v610 = vunpack.c.l.b16 %v586
        %v611 = vunpack.c.l.b16 %v587
        %v612 = vunpack.c.l.b16 %v588
        %v613 = vunpack.c.l.b16 %v589
        %v614 = vunpack.c.l.b16 %v590
        %v615 = vunpack.c.l.b16 %v591
        %v616 = vunpack.c.l.b16 %v592
        %v617 = vunpack.c.l.b16 %v593
        %v618 = vunpack.c.l.b16 %v594
        %v619 = vpack.c.b16 %v610, %v609
        %v620 = vpack.c.b16 %v612, %v611
        %v621 = vpack.c.b16 %v614, %v613
        %v622 = vpack.c.b16 %v616, %v615
        %v623 = vpack.c.b16 %v618, %v617
        %v630 = vsel %vm233, %v598, 0
        %632 = vmatprep.subr.bf16.mxu0 0
        %633 = vmatpush1.bf16.msra.mxu0 %v619
        %634 = vmatprep.subr.bf16.mxu0 0
        %635 = vmatpush1.bf16.msra.mxu0 %v620
        %636 = vmatprep.subr.bf16.mxu0 0
        %637 = vmatpush1.bf16.msra.mxu0 %v621
        %638 = vmatprep.subr.bf16.mxu0 0
        %639 = vmatpush1.bf16.msra.mxu0 %v622
        %640 = vmatprep.subr.bf16.mxu0 0
        %641 = vmatpush1.bf16.msra.mxu0 %v623
        %642 = vmatprep.subr.bf16.mxu0 0
        %643 = vmatpush1.bf16.msra.mxu0 0
        %644 = vmatprep.subr.bf16.mxu0 0
        %645 = vmatpush1.bf16.msra.mxu0 0
        %646 = vmatprep.subr.bf16.mxu0 0
        %647 = vmatpush1.bf16.msra.mxu0 0
        %648 = vmatprep.subr.bf16.mxu0 0
        %649 = vmatpush1.bf16.msra.mxu0 0
        %650 = vmatprep.subr.bf16.mxu0 0
        %651 = vmatpush1.bf16.msra.mxu0 0
        %652 = vmatprep.subr.bf16.mxu0 0
        %653 = vmatpush1.bf16.msra.mxu0 0
        %654 = vmatprep.subr.bf16.mxu0 0
        %655 = vmatpush1.bf16.msra.mxu0 0
        %656 = vmatprep.subr.bf16.mxu0 0
        %657 = vmatpush1.bf16.msra.mxu0 0
        %658 = vmatprep.subr.bf16.mxu0 0
        %659 = vmatpush1.bf16.msra.mxu0 0
        %660 = vmatprep.subr.bf16.mxu0 0
        %661 = vmatpush1.bf16.msra.mxu0 0
        %662 = vmatprep.subr.bf16.mxu0 0
        %663 = vmatpush1.bf16.msra.mxu0 0
        %664 = vmatprep.mubr.bf16.mxu0 0
        %665 = vmatmul.mubr.bf16.gmra.mrb[0].mxu0 %v630
        %v666 = vpop.f32.mrb[0].mxu0
        %v667 = vadd.f32 0.0, %v666
        %v668 = vpop.f32.mrb[0].mxu0
        %v669 = vpop.f32.mrb[0].mxu0
        %v670 = vadd.f32 0.0, %v669
        %v671 = vpop.f32.mrb[0].mxu0
        %672 = vdwg.mxu0
        %v673 = vadd.f32 %v582, %v667
        %v674 = vadd.f32 %v583, %v670
        %675 = vst [vmem:[#allocation2] sm:$0xff] %v673
        %676 = vst [vmem:[#allocation2 + $0x8] sm:$0xff] %v674
        %v677 = vld [vmem:[#allocation2] sm:$0xff]
        %v678 = vld [vmem:[#allocation2 + $0x8] sm:$0xff]
        %v679 = vld [vmem:[%s2] sm:$0x1]
        %v681 = vlaneseq
        %v682 = vshrl.u32 %v681, 7
        %v683 = vsub.s32 0, %v682
        %v684 = vrot.slane %v679, %v683
        %v686 = vadd.f32 %v677, %v684
        %v687 = vadd.f32 %v678, %v684
        %v688 = vmax.f32 %v686, 0.0
        %v689 = vmax.f32 %v687, 0.0
        %690 = vst [vmem:[%s178] sm:$0xff] %v688
        %691 = vst [vmem:[%s178 + $0x8] sm:$0xff] %v689
        %s692 = sand.u32 %s94, 1
        %s693 = scalar_lea.sflag [#allocation5], %s692
        %s694 = sand.u32 %s94, 1
        %s695 = smul.addr %s694, 16
        %s696 = scalar_lea.vmem [#allocation6], %s695
        // Predicated region
        $region37: #{tpu_custom_call.1} parent=31 // pred_check
          %p697 = pneg %p104
        $region38: #{tpu_custom_call.1} parent=31 // pred_check_branch
          %699 = sbr.rel (%p697) target = $region40
        $region39: #{tpu_custom_call.1} parent=31 // pred_region
          %s701 = ssub.s32 256, 256
          %702 = vsyncadd %s693, %s701
          %s703 = smul.addr %s18, 2
          %s704 = smul.addr %s703, 128
          %s705 = scalar_lea.hbm %s3, %s704
          %s706 = sshll.u32 %s696, 4
          %s707 = int_to_ptr.vmem [resolvable:$true] %s706
          %712 = dma.vmem_to_hbm [thread:$0]  %s707, 256, %s705, %s693, 128, 128, 8
        $region40: #{tpu_custom_call.1} parent=31 // pred_fallthru
          _
      $region32: #{tpu_custom_call.1} parent=5 // pred_fallthru
        _
      %p713 = scmp.le.s32.totalorder 2, %s13
      // Predicated region
      $region41: #{tpu_custom_call.1} parent=5 // pred_check
        %p714 = pneg %p713
      $region42: #{tpu_custom_call.1} parent=5 // pred_check_branch
        %716 = sbr.rel (%p714) target = $region44
      $region43: #{tpu_custom_call.1} parent=5 // pred_region
        %s717 = ssub.s32 %s13, 2
        // Predicated region
        $region45: #{tpu_custom_call.1} parent=43 // pred_check
          %p718 = pneg %p110
        $region46: #{tpu_custom_call.1} parent=43 // pred_check_branch
          %720 = sbr.rel (%p718) target = $region48
        $region47: #{tpu_custom_call.1} parent=43 // pred_region
          %s721 = sand.u32 %s95, 1
          %s722 = scalar_lea.sflag [#allocation5], %s721
          %s723 = sand.u32 %s95, 1
          %s724 = smul.addr %s723, 16
          %s725 = scalar_lea.vmem [#allocation6], %s724
          %726 = dma.done %s722, 256
        $region48: #{tpu_custom_call.1} parent=43 // pred_fallthru
          _
      $region44: #{tpu_custom_call.1} parent=5 // pred_fallthru
        _
    $region6: #{tpu_custom_call.1} parent=1 // loop_footer
      %s17 = sadd.s32 1, %s13
    $region7: #{tpu_custom_call.1} parent=1 // loop_footer_branch
      %12 = sbr.rel target = $region3
    $region8: #{tpu_custom_call.1} parent=1 // loop_exit
      _
    %727 = vsyncpa [#allocation4], 1
    %s728 = scalar_lea.sflag [#allocation4], 1
    %729 = vsyncpa %s728, 1
    %730 = vsyncpa [#allocation5], 1
    %s731 = scalar_lea.sflag [#allocation5], 1
    %732 = vsyncpa %s731, 1

</llo_original>
